<compile_context>
chip_gen: v6e
topology: v6e:2x2x1
jax: 0.10.0
libtpu: 0.0.40
codegen_flags: <defaults>
</compile_context>

<pallas_src>
import numpy as np
import jax
import jax.numpy as jnp
from jax.experimental import pallas as pl
from jax.experimental.pallas import tpu as pltpu


def _biaffine_post_kernel(scores_ref, mask_col_ref, mask_row_ref, out_ref):
    # scores_ref:   (1, TS, S, L)  native dtype (f32 / bf16 / ...)
    # mask_col_ref: (1, TS, 1)     int32   (attention_mask tile for start pos)
    # mask_row_ref: (1, 1, S)      int32   (attention_mask for end pos)
    # out_ref:      (1, TS, S)     int32
    s = scores_ref[0]                                        # (TS, S, L)
    L = s.shape[-1]

    # argmax over the label axis, first-occurrence tie-break like torch/numpy.
    # NaN is treated as the maximum (matches torch.argmax), so `hit` is never
    # all-false and the sentinel L can never be produced.
    mx = jnp.max(s, axis=-1, keepdims=True)                  # (TS, S, 1)
    idx = jax.lax.broadcasted_iota(jnp.int32, s.shape, 2)    # (TS, S, L)
    hit = (s == mx) | jnp.isnan(s)
    arg = jnp.min(jnp.where(hit, idx, L), axis=-1)           # (TS, S) int32

    # masked_fill: zero out pairs where either position is padding.
    pair_valid = (mask_col_ref[0] * mask_row_ref[0]) > 0     # (TS,1)*(1,S)->(TS,S)
    out_ref[0] = jnp.where(pair_valid, arg, 0).astype(jnp.int32)


def _pick_ts(S, L, itemsize, target_bytes):
    """Largest start-pos tile (multiple of 8, divides S) with block <= target."""
    if S % 8 != 0:
        return S  # must take the full dimension (block dim == array dim)
    candidates = [ts for ts in range(8, S + 1, 8) if S % ts == 0]
    fitting = [ts for ts in candidates if ts * S * L * itemsize <= target_bytes]
    return max(fitting) if fitting else min(candidates)


def biaffine_argmax_mask(scores, attention_mask, *,
                         target_block_bytes=2 * 1024 * 1024):
    """argmax(-1) + pairwise masked_fill on TPU via Pallas.

    scores:         (B, S, S, L), any float dtype (reduced in native dtype)
    attention_mask: (B, S), bool/int
    returns:        (B, S, S) int32 label ids (0 where either position padded)
    """
    B, S, S2, L = scores.shape
    assert S == S2, "biaffine score tensor must be square over positions"

    ts = _pick_ts(S, L, jnp.dtype(scores.dtype).itemsize, target_block_bytes)

    mask_i32 = attention_mask.astype(jnp.int32)
    mask_col = mask_i32.reshape(B, S, 1)
    mask_row = mask_i32.reshape(B, 1, S)

    return pl.pallas_call(
        _biaffine_post_kernel,
        out_shape=jax.ShapeDtypeStruct((B, S, S), jnp.int32),
        grid_spec=pltpu.PrefetchScalarGridSpec(
            num_scalar_prefetch=0,
            grid=(B, S // ts),
            in_specs=[
                pl.BlockSpec((1, ts, S, L), lambda b, i: (b, i, 0, 0)),
                pl.BlockSpec((1, ts, 1), lambda b, i: (b, i, 0)),
                pl.BlockSpec((1, 1, S), lambda b, i: (b, 0, 0)),
            ],
            out_specs=pl.BlockSpec((1, ts, S), lambda b, i: (b, i, 0)),
        ),
        compiler_params=pltpu.CompilerParams(
            dimension_semantics=("parallel", "parallel")),
    )(scores, mask_col, mask_row)


def _extract_spans(arr):
    """Replicates the defaultlist + np.where span extraction (host side)."""
    results = [[] for _ in range(arr.shape[0])]
    for b, start, end in zip(*np.where(arr > 0)):
        results[int(b)].append((int(arr[b, start, end]), int(start), int(end)))
    return results


def biaffine_postprocess(outputs, labels=None, attention_mask=None):
    """Full BiaffinePostProcess.forward equivalent."""
    # TODO(synk): span extraction (defaultlist + np.where) is data-dependent
    # host-side Python in the original module; it stays on the host here.
    logits = np.asarray(
        jax.device_get(biaffine_argmax_mask(outputs[0], attention_mask)))
    results = _extract_spans(logits)
    if labels is not None:
        new_labels = _extract_spans(np.asarray(jax.device_get(labels)))
        return results, new_labels
    return results


if __name__ == "__main__":
    key = jax.random.PRNGKey(0)
    B, S, L = 2, 16, 8  # batch, sequence length, number of labels

    k_scores, _ = jax.random.split(key)
    scores = jax.random.normal(k_scores, (B, S, S, L), dtype=jnp.float32)

    # deterministic attention mask: sequence lengths [16, 9]
    lengths = jnp.array([16, 9], dtype=jnp.int32)
    attention_mask = (jnp.arange(S)[None, :] < lengths[:, None]).astype(jnp.int32)

    # run the Pallas kernel and block on the result
    logits = biaffine_argmax_mask(scores, attention_mask)
    jax.block_until_ready(logits)

    # reference for the device-side math
    pair = (attention_mask[:, :, None] * attention_mask[:, None, :]) > 0
    ref = jnp.where(pair, jnp.argmax(scores, axis=-1).astype(jnp.int32), 0)
    np.testing.assert_array_equal(np.asarray(logits), np.asarray(ref))

    # native-dtype (bf16) path, with a tiny block budget to force TS < S and
    # exercise the tiled (B, S//TS) grid / index maps.
    scores_bf16 = scores.astype(jnp.bfloat16)
    logits_bf16 = biaffine_argmax_mask(
        scores_bf16, attention_mask, target_block_bytes=8 * S * L * 2)
    jax.block_until_ready(logits_bf16)
    ref_bf16 = jnp.where(pair, jnp.argmax(scores_bf16, axis=-1).astype(jnp.int32), 0)
    np.testing.assert_array_equal(np.asarray(logits_bf16), np.asarray(ref_bf16))

    # full forward equivalent (kernel + host-side span extraction)
    results = biaffine_postprocess((scores,), attention_mask=attention_mask)
    assert len(results) == B

    print("KERNEL_OK")
</pallas_src>

<mosaic_0001>
module attributes {stable_mosaic.version = 11 : i64} {
  func.func @_biaffine_post_kernel(%arg0: i32, %arg1: i32, %arg2: memref<1x16x16x8xf32, #tpu.memory_space<vmem>>, %arg3: memref<1x16x1xi32, #tpu.memory_space<vmem>>, %arg4: memref<1x1x16xi32, #tpu.memory_space<vmem>>, %arg5: memref<1x16x16xi32, #tpu.memory_space<vmem>>) attributes {dimension_semantics = [#tpu.dimension_semantics<parallel>, #tpu.dimension_semantics<parallel>], iteration_bounds = array<i64: 2, 1>, scalar_prefetch = 0 : i64, scratch_operands = 0 : i64, tpu.core_type = #tpu.core_type<tc>, window_params = [{transform_indices = @transform_0, window_bounds = array<i64: 1, 16, 16, 8>}, {transform_indices = @transform_1, window_bounds = array<i64: 1, 16, 1>}, {transform_indices = @transform_2, window_bounds = array<i64: 1, 1, 16>}, {transform_indices = @transform_3, window_bounds = array<i64: 1, 16, 16>}]} {
    %c0 = arith.constant 0 : index
    %c0_0 = arith.constant 0 : index
    %c0_1 = arith.constant 0 : index
    %c0_2 = arith.constant 0 : index
    %0 = vector.load %arg2[%c0, %c0_0, %c0_1, %c0_2] : memref<1x16x16x8xf32, #tpu.memory_space<vmem>>, vector<1x16x16x8xf32>
    %1 = vector.shape_cast %0 : vector<1x16x16x8xf32> to vector<16x16x8xf32>
    %cst = arith.constant dense<0xFF800000> : vector<16x16xf32>
    %2 = vector.multi_reduction <maximumf>, %1, %cst [2] : vector<16x16x8xf32> to vector<16x16xf32>
    %3 = vector.shape_cast %2 : vector<16x16xf32> to vector<16x16x1xf32>
    %4 = tpu.iota {dimensions = array<i32: 2>} : vector<16x16x8xi32>
    %5 = vector.broadcast %3 : vector<16x16x1xf32> to vector<16x16x8xf32>
    %6 = arith.cmpf oeq, %1, %5 : vector<16x16x8xf32>
    %7 = arith.cmpf one, %1, %1 : vector<16x16x8xf32>
    %8 = arith.ori %6, %7 : vector<16x16x8xi1>
    %c8_i32 = arith.constant 8 : i32
    %9 = vector.broadcast %c8_i32 : i32 to vector<16x16x8xi32>
    %10 = arith.select %8, %4, %9 : vector<16x16x8xi1>, vector<16x16x8xi32>
    %cst_3 = arith.constant dense<2147483647> : vector<16x16xi32>
    %11 = vector.multi_reduction <minsi>, %10, %cst_3 [2] : vector<16x16x8xi32> to vector<16x16xi32>
    %c0_4 = arith.constant 0 : index
    %c0_5 = arith.constant 0 : index
    %c0_6 = arith.constant 0 : index
    %12 = vector.load %arg3[%c0_4, %c0_5, %c0_6] : memref<1x16x1xi32, #tpu.memory_space<vmem>>, vector<1x16x1xi32>
    %13 = vector.shape_cast %12 : vector<1x16x1xi32> to vector<16x1xi32>
    %c0_7 = arith.constant 0 : index
    %c0_8 = arith.constant 0 : index
    %c0_9 = arith.constant 0 : index
    %14 = vector.load %arg4[%c0_7, %c0_8, %c0_9] : memref<1x1x16xi32, #tpu.memory_space<vmem>>, vector<1x1x16xi32>
    %15 = vector.shape_cast %14 : vector<1x1x16xi32> to vector<1x16xi32>
    %16 = vector.broadcast %13 : vector<16x1xi32> to vector<16x16xi32>
    %17 = vector.broadcast %15 : vector<1x16xi32> to vector<16x16xi32>
    %18 = arith.muli %16, %17 : vector<16x16xi32>
    %c0_i32 = arith.constant 0 : i32
    %19 = vector.broadcast %c0_i32 : i32 to vector<16x16xi32>
    %20 = arith.cmpi sgt, %18, %19 : vector<16x16xi32>
    %c0_i32_10 = arith.constant 0 : i32
    %21 = vector.broadcast %c0_i32_10 : i32 to vector<16x16xi32>
    %22 = arith.select %20, %11, %21 : vector<16x16xi1>, vector<16x16xi32>
    %c0_11 = arith.constant 0 : index
    %c0_12 = arith.constant 0 : index
    %c0_13 = arith.constant 0 : index
    %23 = vector.load %arg5[%c0_11, %c0_12, %c0_13] : memref<1x16x16xi32, #tpu.memory_space<vmem>>, vector<1x16x16xi32>
    %24 = vector.shape_cast %23 : vector<1x16x16xi32> to vector<16x16xi32>
    %25 = vector.shape_cast %22 : vector<16x16xi32> to vector<1x16x16xi32>
    tpu.vector_store %arg5[%c0_11, %c0_12, %c0_13], %25 {strides = array<i32>} : memref<1x16x16xi32, #tpu.memory_space<vmem>>, vector<1x16x16xi32>,
    return
  }
  func.func @transform_0(%arg0: i32, %arg1: i32) -> (i32, i32, i32, i32) {
    %c0_i32 = arith.constant 0 : i32
    %c0_i32_0 = arith.constant 0 : i32
    %c0_i32_1 = arith.constant 0 : i32
    return %arg0, %arg1, %c0_i32, %c0_i32_0 : i32, i32, i32, i32
  }
  func.func @transform_1(%arg0: i32, %arg1: i32) -> (i32, i32, i32) {
    %c0_i32 = arith.constant 0 : i32
    %c0_i32_0 = arith.constant 0 : i32
    return %arg0, %arg1, %c0_i32 : i32, i32, i32
  }
  func.func @transform_2(%arg0: i32, %arg1: i32) -> (i32, i32, i32) {
    %c0_i32 = arith.constant 0 : i32
    %c0_i32_0 = arith.constant 0 : i32
    %c0_i32_1 = arith.constant 0 : i32
    return %arg0, %c0_i32, %c0_i32_0 : i32, i32, i32
  }
  func.func @transform_3(%arg0: i32, %arg1: i32) -> (i32, i32, i32) {
    %c0_i32 = arith.constant 0 : i32
    %c0_i32_0 = arith.constant 0 : i32
    return %arg0, %arg1, %c0_i32 : i32, i32, i32
  }
}

</mosaic_0001>

<llo_original>
// kernel: tpu_custom_call.1
$region0: #{tpu_custom_call.1}
  #allocation0 [shape = 'u32[]', space=smem, size = 0x4, offset = 0x4, fixed_abs, tag = 'smem constant byte address 0x4 - core index']
  #allocation1 [shape = 'u32[144,128]{1,0:T(1,128)}', space=vmem, size = 0x12000, scoped, tag = 'internal scratch']
  %s0 = inlined_call_operand.vmem [shape: f32[2,16,16,8], index: 0, kind: input, shape index: {}]
  %s1 = inlined_call_operand.vmem [shape: s32[2,16,1], index: 1, kind: input, shape index: {}]
  %s2 = inlined_call_operand.vmem [shape: s32[2,1,16], index: 2, kind: input, shape index: {}]
  %s3 = inlined_call_operand.hbm [shape: s32[2,16,16], index: 3, kind: output, shape index: {}]
  %s4 = sld [smem:[#allocation0]]
  $region45: #{tpu_custom_call.1} parent=0
    _
  %s6 = ssub.s32 1, %s4
  %s7 = scalar_select 0, %s6, %s4
  $region1: #{tpu_custom_call.1} parent=0
    #allocation2 [shape = 'u8[16384]{0}', space=vmem, size = 0x4000, scoped, tag = 'output window, operand 0']
    #allocation3 [shape = 's32[2]{0}', space=sflag, size = 0x8, scoped, tag = 'scoped memory for tpu_custom_call.1']
    %8 = vsyncpa [#allocation3], 0
    %s9 = scalar_lea.sflag [#allocation3], 1
    %10 = vsyncpa %s9, 0
    loop: start=0, step=1, limit=4
    $region2: #{tpu_custom_call.1} parent=1 // loop_pre_header
      _
    $region3: #{tpu_custom_call.1} parent=1 // loop_header
      %s12 = sphi 0, %s16
      %p13 = scmp.ge.s32.totalorder %s12, 4
      %s19 = sphi 0, %s31
      %s20 = sphi 0, %s27
      %s21 = sphi 0, %s19
      %s22 = sphi 0, %s20
      %s23 = sphi 0, %s21
      %s24 = sphi 0, %s22
      %s36 = sphi 0, %s38
      %s39 = sphi 0, %s36
      %s40 = sphi 0, %s39
      %s56 = sphi 0, %s40
      %s64 = sphi 0, %s66
      %s67 = sphi 0, %s64
      %s68 = sphi 0, %s67
      %s84 = sphi 0, %s68
      %s90 = sphi 0, %s92
      %s93 = sphi 0, %s90
      %s94 = sphi 0, %s93
      %s110 = sphi 0, %s94
      %s118 = sphi 0, %s120
      %s121 = sphi 0, %s118
      %s122 = sphi 0, %s121
      %s138 = sphi 0, %s122
    $region4: #{tpu_custom_call.1} parent=1 // loop_header_branch
      %15 = sbr.rel (%p13) target = $region8
    $region5: #{tpu_custom_call.1} parent=1 // loop_body
      %s17 = ssub.s32 %s12, 1
      %s18 = ssub.s32 %s12, 2
      %s25 = sadd.s32 1, %s20
      %p26 = scmp.ge.s32.totalorder %s25, 1
      %s27 = scalar_select %p26, 0, %s25
      %s28 = sadd.s32 1, %s19
      %s29 = scalar_select %p26, %s28, %s19
      %p30 = scmp.ge.s32.totalorder %s29, 2
      %s31 = scalar_select %p30, 0, %s29
      %s32 = ssub.s32 %s19, %s31
      %s33 = ssub.s32 %s20, %s27
      %s34 = sor.u32 %s32, %s33
      %p35 = scmp.eq.s32.totalorder %s34, 0
      %s37 = sadd.s32 %s36, 1
      %s38 = scalar_select %p35, %s36, %s37
      %p41 = pneg %p35
      %p42 = scmp.eq.s32.totalorder %s12, 1
      %p43 = por %p41, %p42
      %p44 = scmp.ne.s32.totalorder %s36, %s39
      %p45 = scmp.eq.s32.totalorder %s12, 0
      %p46 = por %p44, %p45
      %p47 = scmp.ne.s32.totalorder %s36, %s39
      %p48 = scmp.eq.s32.totalorder %s17, 1
      %p49 = por %p47, %p48
      %p50 = scmp.ne.s32.totalorder %s39, %s40
      %p51 = scmp.eq.s32.totalorder %s17, 0
      %p52 = por %p50, %p51
      %p53 = scmp.ne.s32.totalorder %s39, %s40
      %p54 = scmp.eq.s32.totalorder %s18, 1
      %p55 = por %p53, %p54
      %p57 = scmp.ne.s32.totalorder %s40, %s56
      %p58 = scmp.eq.s32.totalorder %s18, 0
      %p59 = por %p57, %p58
      %s60 = ssub.s32 %s19, %s31
      %s61 = ssub.s32 %s20, %s27
      %s62 = sor.u32 %s60, %s61
      %p63 = scmp.eq.s32.totalorder %s62, 0
      %s65 = sadd.s32 %s64, 1
      %s66 = scalar_select %p63, %s64, %s65
      %p69 = pneg %p63
      %p70 = scmp.eq.s32.totalorder %s12, 1
      %p71 = por %p69, %p70
      %p72 = scmp.ne.s32.totalorder %s64, %s67
      %p73 = scmp.eq.s32.totalorder %s12, 0
      %p74 = por %p72, %p73
      %p75 = scmp.ne.s32.totalorder %s64, %s67
      %p76 = scmp.eq.s32.totalorder %s17, 1
      %p77 = por %p75, %p76
      %p78 = scmp.ne.s32.totalorder %s67, %s68
      %p79 = scmp.eq.s32.totalorder %s17, 0
      %p80 = por %p78, %p79
      %p81 = scmp.ne.s32.totalorder %s67, %s68
      %p82 = scmp.eq.s32.totalorder %s18, 1
      %p83 = por %p81, %p82
      %p85 = scmp.ne.s32.totalorder %s68, %s84
      %p86 = scmp.eq.s32.totalorder %s18, 0
      %p87 = por %p85, %p86
      %s88 = ssub.s32 %s19, %s31
      %p89 = scmp.eq.s32.totalorder %s88, 0
      %s91 = sadd.s32 %s90, 1
      %s92 = scalar_select %p89, %s90, %s91
      %p95 = pneg %p89
      %p96 = scmp.eq.s32.totalorder %s12, 1
      %p97 = por %p95, %p96
      %p98 = scmp.ne.s32.totalorder %s90, %s93
      %p99 = scmp.eq.s32.totalorder %s12, 0
      %p100 = por %p98, %p99
      %p101 = scmp.ne.s32.totalorder %s90, %s93
      %p102 = scmp.eq.s32.totalorder %s17, 1
      %p103 = por %p101, %p102
      %p104 = scmp.ne.s32.totalorder %s93, %s94
      %p105 = scmp.eq.s32.totalorder %s17, 0
      %p106 = por %p104, %p105
      %p107 = scmp.ne.s32.totalorder %s93, %s94
      %p108 = scmp.eq.s32.totalorder %s18, 1
      %p109 = por %p107, %p108
      %p111 = scmp.ne.s32.totalorder %s94, %s110
      %p112 = scmp.eq.s32.totalorder %s18, 0
      %p113 = por %p111, %p112
      %s114 = ssub.s32 %s19, %s31
      %s115 = ssub.s32 %s20, %s27
      %s116 = sor.u32 %s114, %s115
      %p117 = scmp.eq.s32.totalorder %s116, 0
      %s119 = sadd.s32 %s118, 1
      %s120 = scalar_select %p117, %s118, %s119
      %p123 = pneg %p117
      %p124 = scmp.eq.s32.totalorder %s12, 1
      %p125 = por %p123, %p124
      %p126 = scmp.ne.s32.totalorder %s118, %s121
      %p127 = scmp.eq.s32.totalorder %s12, 0
      %p128 = por %p126, %p127
      %p129 = scmp.ne.s32.totalorder %s118, %s121
      %p130 = scmp.eq.s32.totalorder %s17, 1
      %p131 = por %p129, %p130
      %p132 = scmp.ne.s32.totalorder %s121, %s122
      %p133 = scmp.eq.s32.totalorder %s17, 0
      %p134 = por %p132, %p133
      %p135 = scmp.ne.s32.totalorder %s121, %s122
      %p136 = scmp.eq.s32.totalorder %s18, 1
      %p137 = por %p135, %p136
      %p139 = scmp.ne.s32.totalorder %s122, %s138
      %p140 = scmp.eq.s32.totalorder %s18, 0
      %p141 = por %p139, %p140
      %p142 = scmp.le.s32.totalorder 1, %s12
      %p143 = scmp.lt.s32.totalorder %s12, 3
      %p144 = pnand %p142, %p143
      %p145 = pneg %p144
      // Predicated region
      $region9: #{tpu_custom_call.1} parent=5 // pred_check
        _
      $region10: #{tpu_custom_call.1} parent=5 // pred_check_branch
        %147 = sbr.rel (%p144) target = $region12
      $region11: #{tpu_custom_call.1} parent=5 // pred_region
        %s148 = ssub.s32 %s12, 1
      $region12: #{tpu_custom_call.1} parent=5 // pred_fallthru
        _
      %p149 = scmp.lt.s32.totalorder %s12, 2
      // Predicated region
      $region13: #{tpu_custom_call.1} parent=5 // pred_check
        %p150 = pneg %p149
      $region14: #{tpu_custom_call.1} parent=5 // pred_check_branch
        %152 = sbr.rel (%p150) target = $region16
      $region15: #{tpu_custom_call.1} parent=5 // pred_region
        // Predicated region
        $region17: #{tpu_custom_call.1} parent=15 // pred_check
          %p153 = pneg %p46
        $region18: #{tpu_custom_call.1} parent=15 // pred_check_branch
          %155 = sbr.rel (%p153) target = $region20
        $region19: #{tpu_custom_call.1} parent=15 // pred_region
          %s156 = smul.u32 16, %s20
          %p157 = scmp.lt.s32.totalorder %s19, 1
          %s158 = scalar_select %p157, %s19, 1
          %p159 = scmp.lt.s32.totalorder %s156, 15
          %s160 = scalar_select %p159, %s156, 15
          %s161 = smul.addr %s160, 2
          %s162 = smul.addr %s158, 32
          %s163 = sadd.s32 %s161, %s162
          %s164 = smul.addr %s163, 8
          %s165 = scalar_lea.vmem %s0, %s164
          %s166 = smul.u32 16, %s20
        $region20: #{tpu_custom_call.1} parent=15 // pred_fallthru
          _
        // Predicated region
        $region21: #{tpu_custom_call.1} parent=15 // pred_check
          %p167 = pneg %p74
        $region22: #{tpu_custom_call.1} parent=15 // pred_check_branch
          %169 = sbr.rel (%p167) target = $region24
        $region23: #{tpu_custom_call.1} parent=15 // pred_region
          %s170 = smul.u32 2, %s20
          %p171 = scmp.lt.s32.totalorder %s19, 1
          %s172 = scalar_select %p171, %s19, 1
          %p173 = scmp.lt.s32.totalorder %s170, 1
          %s174 = scalar_select %p173, %s170, 1
          %s175 = smul.addr %s172, 2
          %s176 = sadd.s32 %s174, %s175
          %s177 = smul.addr %s176, 8
          %s178 = scalar_lea.vmem %s1, %s177
          %s179 = smul.u32 2, %s20
        $region24: #{tpu_custom_call.1} parent=15 // pred_fallthru
          _
        // Predicated region
        $region25: #{tpu_custom_call.1} parent=15 // pred_check
          %p180 = pneg %p100
        $region26: #{tpu_custom_call.1} parent=15 // pred_check_branch
          %182 = sbr.rel (%p180) target = $region28
        $region27: #{tpu_custom_call.1} parent=15 // pred_region
          %p183 = scmp.lt.s32.totalorder %s19, 1
          %s184 = scalar_select %p183, %s19, 1
          %s185 = scalar_lea.vmem %s2, %s184
        $region28: #{tpu_custom_call.1} parent=15 // pred_fallthru
          _
      $region16: #{tpu_custom_call.1} parent=5 // pred_fallthru
        _
      %p186 = scmp.le.s32.totalorder 1, %s12
      %p187 = scmp.lt.s32.totalorder %s12, 3
      %p188 = pnand %p186, %p187
      %p189 = pneg %p188
      // Predicated region
      $region29: #{tpu_custom_call.1} parent=5 // pred_check
        _
      $region30: #{tpu_custom_call.1} parent=5 // pred_check_branch
        %191 = sbr.rel (%p188) target = $region32
      $region31: #{tpu_custom_call.1} parent=5 // pred_region
        %s192 = ssub.s32 %s12, 1
        %s193 = smul.u32 16, %s22
        %p194 = scmp.lt.s32.totalorder %s21, 1
        %s195 = scalar_select %p194, %s21, 1
        %p196 = scmp.lt.s32.totalorder %s193, 15
        %s197 = scalar_select %p196, %s193, 15
        %s198 = smul.addr %s197, 2
        %s199 = smul.addr %s195, 32
        %s200 = sadd.s32 %s198, %s199
        %s201 = smul.addr %s200, 8
        %s202 = scalar_lea.vmem %s0, %s201
        %p203 = pneg %p52
        %p204 = pneg %p49
        %s205 = smul.u32 2, %s22
        %p206 = scmp.lt.s32.totalorder %s21, 1
        %s207 = scalar_select %p206, %s21, 1
        %p208 = scmp.lt.s32.totalorder %s205, 1
        %s209 = scalar_select %p208, %s205, 1
        %s210 = smul.addr %s207, 2
        %s211 = sadd.s32 %s209, %s210
        %s212 = smul.addr %s211, 8
        %s213 = scalar_lea.vmem %s1, %s212
        %p214 = pneg %p80
        %p215 = pneg %p77
        %p216 = scmp.lt.s32.totalorder %s21, 1
        %s217 = scalar_select %p216, %s21, 1
        %s218 = scalar_lea.vmem %s2, %s217
        %p219 = pneg %p106
        %p220 = pneg %p103
        %p221 = pneg %p134
        %p222 = pneg %p131
        %s223 = sand.u32 %s121, 1
        %s224 = scalar_lea.sflag [#allocation3], %s223
        %s225 = sand.u32 %s121, 1
        %s226 = smul.addr %s225, 16
        %s227 = scalar_lea.vmem [#allocation2], %s226
        %s228 = smul.u32 16, %s22
        %p229 = scmp.lt.s32.totalorder %s21, 1
        %s230 = scalar_select %p229, %s21, 1
        %p231 = scmp.lt.s32.totalorder %s228, 15
        %s232 = scalar_select %p231, %s228, 15
        %s233 = smul.addr %s232, 2
        %s234 = smul.addr %s230, 32
        %s235 = sadd.s32 %s233, %s234
        %s236 = smul.addr %s235, 8
        %s237 = scalar_lea.vmem %s0, %s236
        %s238 = smul.u32 16, %s22
        %s239 = smul.u32 2, %s22
        %p240 = scmp.lt.s32.totalorder %s21, 1
        %s241 = scalar_select %p240, %s21, 1
        %p242 = scmp.lt.s32.totalorder %s239, 1
        %s243 = scalar_select %p242, %s239, 1
        %s244 = smul.addr %s241, 2
        %s245 = sadd.s32 %s243, %s244
        %s246 = smul.addr %s245, 8
        %s247 = scalar_lea.vmem %s1, %s246
        %s248 = smul.u32 2, %s22
        %p249 = scmp.lt.s32.totalorder %s21, 1
        %s250 = scalar_select %p249, %s21, 1
        %s251 = scalar_lea.vmem %s2, %s250
        %s252 = smul.u32 2, %s22
        %v253 = vld [vmem:[%s237] sm:$0xff]
        %v254 = vld [vmem:[%s237 + $0x8] sm:$0xff]
        %v255 = vld [vmem:[%s237 + $0x10] sm:$0xff]
        %v256 = vld [vmem:[%s237 + $0x18] sm:$0xff]
        %v257 = vld [vmem:[%s237 + $0x20] sm:$0xff]
        %v258 = vld [vmem:[%s237 + $0x28] sm:$0xff]
        %v259 = vld [vmem:[%s237 + $0x30] sm:$0xff]
        %v260 = vld [vmem:[%s237 + $0x38] sm:$0xff]
        %v261 = vld [vmem:[%s237 + $0x40] sm:$0xff]
        %v262 = vld [vmem:[%s237 + $0x48] sm:$0xff]
        %v263 = vld [vmem:[%s237 + $0x50] sm:$0xff]
        %v264 = vld [vmem:[%s237 + $0x58] sm:$0xff]
        %v265 = vld [vmem:[%s237 + $0x60] sm:$0xff]
        %v266 = vld [vmem:[%s237 + $0x68] sm:$0xff]
        %v267 = vld [vmem:[%s237 + $0x70] sm:$0xff]
        %v268 = vld [vmem:[%s237 + $0x78] sm:$0xff]
        %v269 = vld [vmem:[%s237 + $0x80] sm:$0xff]
        %v270 = vld [vmem:[%s237 + $0x88] sm:$0xff]
        %v271 = vld [vmem:[%s237 + $0x90] sm:$0xff]
        %v272 = vld [vmem:[%s237 + $0x98] sm:$0xff]
        %v273 = vld [vmem:[%s237 + $0xa0] sm:$0xff]
        %v274 = vld [vmem:[%s237 + $0xa8] sm:$0xff]
        %v275 = vld [vmem:[%s237 + $0xb0] sm:$0xff]
        %v276 = vld [vmem:[%s237 + $0xb8] sm:$0xff]
        %v277 = vld [vmem:[%s237 + $0xc0] sm:$0xff]
        %v278 = vld [vmem:[%s237 + $0xc8] sm:$0xff]
        %v279 = vld [vmem:[%s237 + $0xd0] sm:$0xff]
        %v280 = vld [vmem:[%s237 + $0xd8] sm:$0xff]
        %v281 = vld [vmem:[%s237 + $0xe0] sm:$0xff]
        %v282 = vld [vmem:[%s237 + $0xe8] sm:$0xff]
        %v283 = vld [vmem:[%s237 + $0xf0] sm:$0xff]
        %v284 = vld [vmem:[%s237 + $0xf8] sm:$0xff]
        %vm285 = vcmask 64512
        %v286 = vsel %vm285, %v253, -inf
        %287 = vmax.xlane.f32.xlu0 %v286
        %v288 = vpop.xlane.xlu0 %287
        %v289 = vsel %vm285, %v254, -inf
        %290 = vmax.xlane.f32.xlu0 %v289
        %v291 = vpop.xlane.xlu0 %290
        %v292 = vsel %vm285, %v255, -inf
        %293 = vmax.xlane.f32.xlu0 %v292
        %v294 = vpop.xlane.xlu0 %293
        %v295 = vsel %vm285, %v256, -inf
        %296 = vmax.xlane.f32.xlu0 %v295
        %v297 = vpop.xlane.xlu0 %296
        %v298 = vsel %vm285, %v257, -inf
        %299 = vmax.xlane.f32.xlu0 %v298
        %v300 = vpop.xlane.xlu0 %299
        %v301 = vsel %vm285, %v258, -inf
        %302 = vmax.xlane.f32.xlu0 %v301
        %v303 = vpop.xlane.xlu0 %302
        %v304 = vsel %vm285, %v259, -inf
        %305 = vmax.xlane.f32.xlu0 %v304
        %v306 = vpop.xlane.xlu0 %305
        %v307 = vsel %vm285, %v260, -inf
        %308 = vmax.xlane.f32.xlu0 %v307
        %v309 = vpop.xlane.xlu0 %308
        %v310 = vsel %vm285, %v261, -inf
        %311 = vmax.xlane.f32.xlu0 %v310
        %v312 = vpop.xlane.xlu0 %311
        %v313 = vsel %vm285, %v262, -inf
        %314 = vmax.xlane.f32.xlu0 %v313
        %v315 = vpop.xlane.xlu0 %314
        %v316 = vsel %vm285, %v263, -inf
        %317 = vmax.xlane.f32.xlu0 %v316
        %v318 = vpop.xlane.xlu0 %317
        %v319 = vsel %vm285, %v264, -inf
        %320 = vmax.xlane.f32.xlu0 %v319
        %v321 = vpop.xlane.xlu0 %320
        %v322 = vsel %vm285, %v265, -inf
        %323 = vmax.xlane.f32.xlu0 %v322
        %v324 = vpop.xlane.xlu0 %323
        %v325 = vsel %vm285, %v266, -inf
        %326 = vmax.xlane.f32.xlu0 %v325
        %v327 = vpop.xlane.xlu0 %326
        %v328 = vsel %vm285, %v267, -inf
        %329 = vmax.xlane.f32.xlu0 %v328
        %v330 = vpop.xlane.xlu0 %329
        %v331 = vsel %vm285, %v268, -inf
        %332 = vmax.xlane.f32.xlu0 %v331
        %v333 = vpop.xlane.xlu0 %332
        %v334 = vsel %vm285, %v269, -inf
        %335 = vmax.xlane.f32.xlu0 %v334
        %v336 = vpop.xlane.xlu0 %335
        %v337 = vsel %vm285, %v270, -inf
        %338 = vmax.xlane.f32.xlu0 %v337
        %v339 = vpop.xlane.xlu0 %338
        %v340 = vsel %vm285, %v271, -inf
        %341 = vmax.xlane.f32.xlu0 %v340
        %v342 = vpop.xlane.xlu0 %341
        %v343 = vsel %vm285, %v272, -inf
        %344 = vmax.xlane.f32.xlu0 %v343
        %v345 = vpop.xlane.xlu0 %344
        %v346 = vsel %vm285, %v273, -inf
        %347 = vmax.xlane.f32.xlu0 %v346
        %v348 = vpop.xlane.xlu0 %347
        %v349 = vsel %vm285, %v274, -inf
        %350 = vmax.xlane.f32.xlu0 %v349
        %v351 = vpop.xlane.xlu0 %350
        %v352 = vsel %vm285, %v275, -inf
        %353 = vmax.xlane.f32.xlu0 %v352
        %v354 = vpop.xlane.xlu0 %353
        %v355 = vsel %vm285, %v276, -inf
        %356 = vmax.xlane.f32.xlu0 %v355
        %v357 = vpop.xlane.xlu0 %356
        %v358 = vsel %vm285, %v277, -inf
        %359 = vmax.xlane.f32.xlu0 %v358
        %v360 = vpop.xlane.xlu0 %359
        %v361 = vsel %vm285, %v278, -inf
        %362 = vmax.xlane.f32.xlu0 %v361
        %v363 = vpop.xlane.xlu0 %362
        %v364 = vsel %vm285, %v279, -inf
        %365 = vmax.xlane.f32.xlu0 %v364
        %v366 = vpop.xlane.xlu0 %365
        %v367 = vsel %vm285, %v280, -inf
        %368 = vmax.xlane.f32.xlu0 %v367
        %v369 = vpop.xlane.xlu0 %368
        %v370 = vsel %vm285, %v281, -inf
        %371 = vmax.xlane.f32.xlu0 %v370
        %v372 = vpop.xlane.xlu0 %371
        %v373 = vsel %vm285, %v282, -inf
        %374 = vmax.xlane.f32.xlu0 %v373
        %v375 = vpop.xlane.xlu0 %374
        %v376 = vsel %vm285, %v283, -inf
        %377 = vmax.xlane.f32.xlu0 %v376
        %v378 = vpop.xlane.xlu0 %377
        %v379 = vsel %vm285, %v284, -inf
        %380 = vmax.xlane.f32.xlu0 %v379
        %v381 = vpop.xlane.xlu0 %380
        %v382 = vlaneseq
        %v383 = vand.u32 %v382, 127
        %vm384 = vcmp.eq.f32.partialorder %v253, %v288
        %vm385 = vcmp.eq.f32.partialorder %v254, %v291
        %vm386 = vcmp.eq.f32.partialorder %v255, %v294
        %vm387 = vcmp.eq.f32.partialorder %v256, %v297
        %vm388 = vcmp.eq.f32.partialorder %v257, %v300
        %vm389 = vcmp.eq.f32.partialorder %v258, %v303
        %vm390 = vcmp.eq.f32.partialorder %v259, %v306
        %vm391 = vcmp.eq.f32.partialorder %v260, %v309
        %vm392 = vcmp.eq.f32.partialorder %v261, %v312
        %vm393 = vcmp.eq.f32.partialorder %v262, %v315
        %vm394 = vcmp.eq.f32.partialorder %v263, %v318
        %vm395 = vcmp.eq.f32.partialorder %v264, %v321
        %vm396 = vcmp.eq.f32.partialorder %v265, %v324
        %vm397 = vcmp.eq.f32.partialorder %v266, %v327
        %vm398 = vcmp.eq.f32.partialorder %v267, %v330
        %vm399 = vcmp.eq.f32.partialorder %v268, %v333
        %vm400 = vcmp.eq.f32.partialorder %v269, %v336
        %vm401 = vcmp.eq.f32.partialorder %v270, %v339
        %vm402 = vcmp.eq.f32.partialorder %v271, %v342
        %vm403 = vcmp.eq.f32.partialorder %v272, %v345
        %vm404 = vcmp.eq.f32.partialorder %v273, %v348
        %vm405 = vcmp.eq.f32.partialorder %v274, %v351
        %vm406 = vcmp.eq.f32.partialorder %v275, %v354
        %vm407 = vcmp.eq.f32.partialorder %v276, %v357
        %vm408 = vcmp.eq.f32.partialorder %v277, %v360
        %vm409 = vcmp.eq.f32.partialorder %v278, %v363
        %vm410 = vcmp.eq.f32.partialorder %v279, %v366
        %vm411 = vcmp.eq.f32.partialorder %v280, %v369
        %vm412 = vcmp.eq.f32.partialorder %v281, %v372
        %vm413 = vcmp.eq.f32.partialorder %v282, %v375
        %vm414 = vcmp.eq.f32.partialorder %v283, %v378
        %vm415 = vcmp.eq.f32.partialorder %v284, %v381
        %vm416 = vcmp.ne.f32.partialorder %v253, %v253
        %vm417 = vcmp.ne.f32.partialorder %v254, %v254
        %vm418 = vcmp.ne.f32.partialorder %v255, %v255
        %vm419 = vcmp.ne.f32.partialorder %v256, %v256
        %vm420 = vcmp.ne.f32.partialorder %v257, %v257
        %vm421 = vcmp.ne.f32.partialorder %v258, %v258
        %vm422 = vcmp.ne.f32.partialorder %v259, %v259
        %vm423 = vcmp.ne.f32.partialorder %v260, %v260
        %vm424 = vcmp.ne.f32.partialorder %v261, %v261
        %vm425 = vcmp.ne.f32.partialorder %v262, %v262
        %vm426 = vcmp.ne.f32.partialorder %v263, %v263
        %vm427 = vcmp.ne.f32.partialorder %v264, %v264
        %vm428 = vcmp.ne.f32.partialorder %v265, %v265
        %vm429 = vcmp.ne.f32.partialorder %v266, %v266
        %vm430 = vcmp.ne.f32.partialorder %v267, %v267
        %vm431 = vcmp.ne.f32.partialorder %v268, %v268
        %vm432 = vcmp.ne.f32.partialorder %v269, %v269
        %vm433 = vcmp.ne.f32.partialorder %v270, %v270
        %vm434 = vcmp.ne.f32.partialorder %v271, %v271
        %vm435 = vcmp.ne.f32.partialorder %v272, %v272
        %vm436 = vcmp.ne.f32.partialorder %v273, %v273
        %vm437 = vcmp.ne.f32.partialorder %v274, %v274
        %vm438 = vcmp.ne.f32.partialorder %v275, %v275
        %vm439 = vcmp.ne.f32.partialorder %v276, %v276
        %vm440 = vcmp.ne.f32.partialorder %v277, %v277
        %vm441 = vcmp.ne.f32.partialorder %v278, %v278
        %vm442 = vcmp.ne.f32.partialorder %v279, %v279
        %vm443 = vcmp.ne.f32.partialorder %v280, %v280
        %vm444 = vcmp.ne.f32.partialorder %v281, %v281
        %vm445 = vcmp.ne.f32.partialorder %v282, %v282
        %vm446 = vcmp.ne.f32.partialorder %v283, %v283
        %vm447 = vcmp.ne.f32.partialorder %v284, %v284
        %vm448 = vmor %vm384, %vm416
        %vm449 = vmor %vm385, %vm417
        %vm450 = vmor %vm386, %vm418
        %vm451 = vmor %vm387, %vm419
        %vm452 = vmor %vm388, %vm420
        %vm453 = vmor %vm389, %vm421
        %vm454 = vmor %vm390, %vm422
        %vm455 = vmor %vm391, %vm423
        %vm456 = vmor %vm392, %vm424
        %vm457 = vmor %vm393, %vm425
        %vm458 = vmor %vm394, %vm426
        %vm459 = vmor %vm395, %vm427
        %vm460 = vmor %vm396, %vm428
        %vm461 = vmor %vm397, %vm429
        %vm462 = vmor %vm398, %vm430
        %vm463 = vmor %vm399, %vm431
        %vm464 = vmor %vm400, %vm432
        %vm465 = vmor %vm401, %vm433
        %vm466 = vmor %vm402, %vm434
        %vm467 = vmor %vm403, %vm435
        %vm468 = vmor %vm404, %vm436
        %vm469 = vmor %vm405, %vm437
        %vm470 = vmor %vm406, %vm438
        %vm471 = vmor %vm407, %vm439
        %vm472 = vmor %vm408, %vm440
        %vm473 = vmor %vm409, %vm441
        %vm474 = vmor %vm410, %vm442
        %vm475 = vmor %vm411, %vm443
        %vm476 = vmor %vm412, %vm444
        %vm477 = vmor %vm413, %vm445
        %vm478 = vmor %vm414, %vm446
        %vm479 = vmor %vm415, %vm447
        %v480 = vsel %vm448, %v383, 8
        %v481 = vsel %vm449, %v383, 8
        %v482 = vsel %vm450, %v383, 8
        %v483 = vsel %vm451, %v383, 8
        %v484 = vsel %vm452, %v383, 8
        %v485 = vsel %vm453, %v383, 8
        %v486 = vsel %vm454, %v383, 8
        %v487 = vsel %vm455, %v383, 8
        %v488 = vsel %vm456, %v383, 8
        %v489 = vsel %vm457, %v383, 8
        %v490 = vsel %vm458, %v383, 8
        %v491 = vsel %vm459, %v383, 8
        %v492 = vsel %vm460, %v383, 8
        %v493 = vsel %vm461, %v383, 8
        %v494 = vsel %vm462, %v383, 8
        %v495 = vsel %vm463, %v383, 8
        %v496 = vsel %vm464, %v383, 8
        %v497 = vsel %vm465, %v383, 8
        %v498 = vsel %vm466, %v383, 8
        %v499 = vsel %vm467, %v383, 8
        %v500 = vsel %vm468, %v383, 8
        %v501 = vsel %vm469, %v383, 8
        %v502 = vsel %vm470, %v383, 8
        %v503 = vsel %vm471, %v383, 8
        %v504 = vsel %vm472, %v383, 8
        %v505 = vsel %vm473, %v383, 8
        %v506 = vsel %vm474, %v383, 8
        %v507 = vsel %vm475, %v383, 8
        %v508 = vsel %vm476, %v383, 8
        %v509 = vsel %vm477, %v383, 8
        %v510 = vsel %vm478, %v383, 8
        %v511 = vsel %vm479, %v383, 8
        %v512 = vsel %vm285, %v480, 2147483647
        %v513 = vand.u32 %v512, 65535
        %v514 = vshra.s32 %v512, 16
        %v515 = vcvt.s32.f32 %v513
        %v516 = vcvt.s32.f32 %v514
        %517 = vmin.xlane.f32.xlu0 %v516
        %v518 = vpop.xlane.xlu0 %517
        %vm519 = vcmp.eq.f32.partialorder %v516, %v518
        %v520 = vsel %vm519, %v515, inf
        %521 = vmin.xlane.f32.xlu0 %v520
        %v522 = vpop.xlane.xlu0 %521
        %v523 = vcvt.f32.s32 %v522
        %v524 = vcvt.f32.s32 %v518
        %v525 = vshll.u32 %v524, 16
        %v526 = vadd.s32 %v525, %v523
        %v527 = vsel %vm285, %v481, 2147483647
        %v528 = vand.u32 %v527, 65535
        %v529 = vshra.s32 %v527, 16
        %v530 = vcvt.s32.f32 %v528
        %v531 = vcvt.s32.f32 %v529
        %532 = vmin.xlane.f32.xlu0 %v531
        %v533 = vpop.xlane.xlu0 %532
        %vm534 = vcmp.eq.f32.partialorder %v531, %v533
        %v535 = vsel %vm534, %v530, inf
        %536 = vmin.xlane.f32.xlu0 %v535
        %v537 = vpop.xlane.xlu0 %536
        %v538 = vcvt.f32.s32 %v537
        %v539 = vcvt.f32.s32 %v533
        %v540 = vshll.u32 %v539, 16
        %v541 = vadd.s32 %v540, %v538
        %v542 = vsel %vm285, %v482, 2147483647
        %v543 = vand.u32 %v542, 65535
        %v544 = vshra.s32 %v542, 16
        %v545 = vcvt.s32.f32 %v543
        %v546 = vcvt.s32.f32 %v544
        %547 = vmin.xlane.f32.xlu0 %v546
        %v548 = vpop.xlane.xlu0 %547
        %vm549 = vcmp.eq.f32.partialorder %v546, %v548
        %v550 = vsel %vm549, %v545, inf
        %551 = vmin.xlane.f32.xlu0 %v550
        %v552 = vpop.xlane.xlu0 %551
        %v553 = vcvt.f32.s32 %v552
        %v554 = vcvt.f32.s32 %v548
        %v555 = vshll.u32 %v554, 16
        %v556 = vadd.s32 %v555, %v553
        %v557 = vsel %vm285, %v483, 2147483647
        %v558 = vand.u32 %v557, 65535
        %v559 = vshra.s32 %v557, 16
        %v560 = vcvt.s32.f32 %v558
        %v561 = vcvt.s32.f32 %v559
        %562 = vmin.xlane.f32.xlu0 %v561
        %v563 = vpop.xlane.xlu0 %562
        %vm564 = vcmp.eq.f32.partialorder %v561, %v563
        %v565 = vsel %vm564, %v560, inf
        %566 = vmin.xlane.f32.xlu0 %v565
        %v567 = vpop.xlane.xlu0 %566
        %v568 = vcvt.f32.s32 %v567
        %v569 = vcvt.f32.s32 %v563
        %v570 = vshll.u32 %v569, 16
        %v571 = vadd.s32 %v570, %v568
        %v572 = vsel %vm285, %v484, 2147483647
        %v573 = vand.u32 %v572, 65535
        %v574 = vshra.s32 %v572, 16
        %v575 = vcvt.s32.f32 %v573
        %v576 = vcvt.s32.f32 %v574
        %577 = vmin.xlane.f32.xlu0 %v576
        %v578 = vpop.xlane.xlu0 %577
        %vm579 = vcmp.eq.f32.partialorder %v576, %v578
        %v580 = vsel %vm579, %v575, inf
        %581 = vmin.xlane.f32.xlu0 %v580
        %v582 = vpop.xlane.xlu0 %581
        %v583 = vcvt.f32.s32 %v582
        %v584 = vcvt.f32.s32 %v578
        %v585 = vshll.u32 %v584, 16
        %v586 = vadd.s32 %v585, %v583
        %v587 = vsel %vm285, %v485, 2147483647
        %v588 = vand.u32 %v587, 65535
        %v589 = vshra.s32 %v587, 16
        %v590 = vcvt.s32.f32 %v588
        %v591 = vcvt.s32.f32 %v589
        %592 = vmin.xlane.f32.xlu0 %v591
        %v593 = vpop.xlane.xlu0 %592
        %vm594 = vcmp.eq.f32.partialorder %v591, %v593
        %v595 = vsel %vm594, %v590, inf
        %596 = vmin.xlane.f32.xlu0 %v595
        %v597 = vpop.xlane.xlu0 %596
        %v598 = vcvt.f32.s32 %v597
        %v599 = vcvt.f32.s32 %v593
        %v600 = vshll.u32 %v599, 16
        %v601 = vadd.s32 %v600, %v598
        %v602 = vsel %vm285, %v486, 2147483647
        %v603 = vand.u32 %v602, 65535
        %v604 = vshra.s32 %v602, 16
        %v605 = vcvt.s32.f32 %v603
        %v606 = vcvt.s32.f32 %v604
        %607 = vmin.xlane.f32.xlu0 %v606
        %v608 = vpop.xlane.xlu0 %607
        %vm609 = vcmp.eq.f32.partialorder %v606, %v608
        %v610 = vsel %vm609, %v605, inf
        %611 = vmin.xlane.f32.xlu0 %v610
        %v612 = vpop.xlane.xlu0 %611
        %v613 = vcvt.f32.s32 %v612
        %v614 = vcvt.f32.s32 %v608
        %v615 = vshll.u32 %v614, 16
        %v616 = vadd.s32 %v615, %v613
        %v617 = vsel %vm285, %v487, 2147483647
        %v618 = vand.u32 %v617, 65535
        %v619 = vshra.s32 %v617, 16
        %v620 = vcvt.s32.f32 %v618
        %v621 = vcvt.s32.f32 %v619
        %622 = vmin.xlane.f32.xlu0 %v621
        %v623 = vpop.xlane.xlu0 %622
        %vm624 = vcmp.eq.f32.partialorder %v621, %v623
        %v625 = vsel %vm624, %v620, inf
        %626 = vmin.xlane.f32.xlu0 %v625
        %v627 = vpop.xlane.xlu0 %626
        %v628 = vcvt.f32.s32 %v627
        %v629 = vcvt.f32.s32 %v623
        %v630 = vshll.u32 %v629, 16
        %v631 = vadd.s32 %v630, %v628
        %v632 = vsel %vm285, %v488, 2147483647
        %v633 = vand.u32 %v632, 65535
        %v634 = vshra.s32 %v632, 16
        %v635 = vcvt.s32.f32 %v633
        %v636 = vcvt.s32.f32 %v634
        %637 = vmin.xlane.f32.xlu0 %v636
        %v638 = vpop.xlane.xlu0 %637
        %vm639 = vcmp.eq.f32.partialorder %v636, %v638
        %v640 = vsel %vm639, %v635, inf
        %641 = vmin.xlane.f32.xlu0 %v640
        %v642 = vpop.xlane.xlu0 %641
        %v643 = vcvt.f32.s32 %v642
        %v644 = vcvt.f32.s32 %v638
        %v645 = vshll.u32 %v644, 16
        %v646 = vadd.s32 %v645, %v643
        %v647 = vsel %vm285, %v489, 2147483647
        %v648 = vand.u32 %v647, 65535
        %v649 = vshra.s32 %v647, 16
        %v650 = vcvt.s32.f32 %v648
        %v651 = vcvt.s32.f32 %v649
        %652 = vmin.xlane.f32.xlu0 %v651
        %v653 = vpop.xlane.xlu0 %652
        %vm654 = vcmp.eq.f32.partialorder %v651, %v653
        %v655 = vsel %vm654, %v650, inf
        %656 = vmin.xlane.f32.xlu0 %v655
        %v657 = vpop.xlane.xlu0 %656
        %v658 = vcvt.f32.s32 %v657
        %v659 = vcvt.f32.s32 %v653
        %v660 = vshll.u32 %v659, 16
        %v661 = vadd.s32 %v660, %v658
        %v662 = vsel %vm285, %v490, 2147483647
        %v663 = vand.u32 %v662, 65535
        %v664 = vshra.s32 %v662, 16
        %v665 = vcvt.s32.f32 %v663
        %v666 = vcvt.s32.f32 %v664
        %667 = vmin.xlane.f32.xlu0 %v666
        %v668 = vpop.xlane.xlu0 %667
        %vm669 = vcmp.eq.f32.partialorder %v666, %v668
        %v670 = vsel %vm669, %v665, inf
        %671 = vmin.xlane.f32.xlu0 %v670
        %v672 = vpop.xlane.xlu0 %671
        %v673 = vcvt.f32.s32 %v672
        %v674 = vcvt.f32.s32 %v668
        %v675 = vshll.u32 %v674, 16
        %v676 = vadd.s32 %v675, %v673
        %v677 = vsel %vm285, %v491, 2147483647
        %v678 = vand.u32 %v677, 65535
        %v679 = vshra.s32 %v677, 16
        %v680 = vcvt.s32.f32 %v678
        %v681 = vcvt.s32.f32 %v679
        %682 = vmin.xlane.f32.xlu0 %v681
        %v683 = vpop.xlane.xlu0 %682
        %vm684 = vcmp.eq.f32.partialorder %v681, %v683
        %v685 = vsel %vm684, %v680, inf
        %686 = vmin.xlane.f32.xlu0 %v685
        %v687 = vpop.xlane.xlu0 %686
        %v688 = vcvt.f32.s32 %v687
        %v689 = vcvt.f32.s32 %v683
        %v690 = vshll.u32 %v689, 16
        %v691 = vadd.s32 %v690, %v688
        %v692 = vsel %vm285, %v492, 2147483647
        %v693 = vand.u32 %v692, 65535
        %v694 = vshra.s32 %v692, 16
        %v695 = vcvt.s32.f32 %v693
        %v696 = vcvt.s32.f32 %v694
        %697 = vmin.xlane.f32.xlu0 %v696
        %v698 = vpop.xlane.xlu0 %697
        %vm699 = vcmp.eq.f32.partialorder %v696, %v698
        %v700 = vsel %vm699, %v695, inf
        %701 = vmin.xlane.f32.xlu0 %v700
        %v702 = vpop.xlane.xlu0 %701
        %v703 = vcvt.f32.s32 %v702
        %v704 = vcvt.f32.s32 %v698
        %v705 = vshll.u32 %v704, 16
        %v706 = vadd.s32 %v705, %v703
        %v707 = vsel %vm285, %v493, 2147483647
        %v708 = vand.u32 %v707, 65535
        %v709 = vshra.s32 %v707, 16
        %v710 = vcvt.s32.f32 %v708
        %v711 = vcvt.s32.f32 %v709
        %712 = vmin.xlane.f32.xlu0 %v711
        %v713 = vpop.xlane.xlu0 %712
        %vm714 = vcmp.eq.f32.partialorder %v711, %v713
        %v715 = vsel %vm714, %v710, inf
        %716 = vmin.xlane.f32.xlu0 %v715
        %v717 = vpop.xlane.xlu0 %716
        %v718 = vcvt.f32.s32 %v717
        %v719 = vcvt.f32.s32 %v713
        %v720 = vshll.u32 %v719, 16
        %v721 = vadd.s32 %v720, %v718
        %v722 = vsel %vm285, %v494, 2147483647
        %v723 = vand.u32 %v722, 65535
        %v724 = vshra.s32 %v722, 16
        %v725 = vcvt.s32.f32 %v723
        %v726 = vcvt.s32.f32 %v724
        %727 = vmin.xlane.f32.xlu0 %v726
        %v728 = vpop.xlane.xlu0 %727
        %vm729 = vcmp.eq.f32.partialorder %v726, %v728
        %v730 = vsel %vm729, %v725, inf
        %731 = vmin.xlane.f32.xlu0 %v730
        %v732 = vpop.xlane.xlu0 %731
        %v733 = vcvt.f32.s32 %v732
        %v734 = vcvt.f32.s32 %v728
        %v735 = vshll.u32 %v734, 16
        %v736 = vadd.s32 %v735, %v733
        %v737 = vsel %vm285, %v495, 2147483647
        %v738 = vand.u32 %v737, 65535
        %v739 = vshra.s32 %v737, 16
        %v740 = vcvt.s32.f32 %v738
        %v741 = vcvt.s32.f32 %v739
        %742 = vmin.xlane.f32.xlu0 %v741
        %v743 = vpop.xlane.xlu0 %742
        %vm744 = vcmp.eq.f32.partialorder %v741, %v743
        %v745 = vsel %vm744, %v740, inf
        %746 = vmin.xlane.f32.xlu0 %v745
        %v747 = vpop.xlane.xlu0 %746
        %v748 = vcvt.f32.s32 %v747
        %v749 = vcvt.f32.s32 %v743
        %v750 = vshll.u32 %v749, 16
        %v751 = vadd.s32 %v750, %v748
        %v752 = vsel %vm285, %v496, 2147483647
        %v753 = vand.u32 %v752, 65535
        %v754 = vshra.s32 %v752, 16
        %v755 = vcvt.s32.f32 %v753
        %v756 = vcvt.s32.f32 %v754
        %757 = vmin.xlane.f32.xlu0 %v756
        %v758 = vpop.xlane.xlu0 %757
        %vm759 = vcmp.eq.f32.partialorder %v756, %v758
        %v760 = vsel %vm759, %v755, inf
        %761 = vmin.xlane.f32.xlu0 %v760
        %v762 = vpop.xlane.xlu0 %761
        %v763 = vcvt.f32.s32 %v762
        %v764 = vcvt.f32.s32 %v758
        %v765 = vshll.u32 %v764, 16
        %v766 = vadd.s32 %v765, %v763
        %v767 = vsel %vm285, %v497, 2147483647
        %v768 = vand.u32 %v767, 65535
        %v769 = vshra.s32 %v767, 16
        %v770 = vcvt.s32.f32 %v768
        %v771 = vcvt.s32.f32 %v769
        %772 = vmin.xlane.f32.xlu0 %v771
        %v773 = vpop.xlane.xlu0 %772
        %vm774 = vcmp.eq.f32.partialorder %v771, %v773
        %v775 = vsel %vm774, %v770, inf
        %776 = vmin.xlane.f32.xlu0 %v775
        %v777 = vpop.xlane.xlu0 %776
        %v778 = vcvt.f32.s32 %v777
        %v779 = vcvt.f32.s32 %v773
        %v780 = vshll.u32 %v779, 16
        %v781 = vadd.s32 %v780, %v778
        %v782 = vsel %vm285, %v498, 2147483647
        %v783 = vand.u32 %v782, 65535
        %v784 = vshra.s32 %v782, 16
        %v785 = vcvt.s32.f32 %v783
        %v786 = vcvt.s32.f32 %v784
        %787 = vmin.xlane.f32.xlu0 %v786
        %v788 = vpop.xlane.xlu0 %787
        %vm789 = vcmp.eq.f32.partialorder %v786, %v788
        %v790 = vsel %vm789, %v785, inf
        %791 = vmin.xlane.f32.xlu0 %v790
        %v792 = vpop.xlane.xlu0 %791
        %v793 = vcvt.f32.s32 %v792
        %v794 = vcvt.f32.s32 %v788
        %v795 = vshll.u32 %v794, 16
        %v796 = vadd.s32 %v795, %v793
        %v797 = vsel %vm285, %v499, 2147483647
        %v798 = vand.u32 %v797, 65535
        %v799 = vshra.s32 %v797, 16
        %v800 = vcvt.s32.f32 %v798
        %v801 = vcvt.s32.f32 %v799
        %802 = vmin.xlane.f32.xlu0 %v801
        %v803 = vpop.xlane.xlu0 %802
        %vm804 = vcmp.eq.f32.partialorder %v801, %v803
        %v805 = vsel %vm804, %v800, inf
        %806 = vmin.xlane.f32.xlu0 %v805
        %v807 = vpop.xlane.xlu0 %806
        %v808 = vcvt.f32.s32 %v807
        %v809 = vcvt.f32.s32 %v803
        %v810 = vshll.u32 %v809, 16
        %v811 = vadd.s32 %v810, %v808
        %v812 = vsel %vm285, %v500, 2147483647
        %v813 = vand.u32 %v812, 65535
        %v814 = vshra.s32 %v812, 16
        %v815 = vcvt.s32.f32 %v813
        %v816 = vcvt.s32.f32 %v814
        %817 = vmin.xlane.f32.xlu0 %v816
        %v818 = vpop.xlane.xlu0 %817
        %vm819 = vcmp.eq.f32.partialorder %v816, %v818
        %v820 = vsel %vm819, %v815, inf
        %821 = vmin.xlane.f32.xlu0 %v820
        %v822 = vpop.xlane.xlu0 %821
        %v823 = vcvt.f32.s32 %v822
        %v824 = vcvt.f32.s32 %v818
        %v825 = vshll.u32 %v824, 16
        %v826 = vadd.s32 %v825, %v823
        %v827 = vsel %vm285, %v501, 2147483647
        %v828 = vand.u32 %v827, 65535
        %v829 = vshra.s32 %v827, 16
        %v830 = vcvt.s32.f32 %v828
        %v831 = vcvt.s32.f32 %v829
        %832 = vmin.xlane.f32.xlu0 %v831
        %v833 = vpop.xlane.xlu0 %832
        %vm834 = vcmp.eq.f32.partialorder %v831, %v833
        %v835 = vsel %vm834, %v830, inf
        %836 = vmin.xlane.f32.xlu0 %v835
        %v837 = vpop.xlane.xlu0 %836
        %v838 = vcvt.f32.s32 %v837
        %v839 = vcvt.f32.s32 %v833
        %v840 = vshll.u32 %v839, 16
        %v841 = vadd.s32 %v840, %v838
        %v842 = vsel %vm285, %v502, 2147483647
        %v843 = vand.u32 %v842, 65535
        %v844 = vshra.s32 %v842, 16
        %v845 = vcvt.s32.f32 %v843
        %v846 = vcvt.s32.f32 %v844
        %847 = vmin.xlane.f32.xlu0 %v846
        %v848 = vpop.xlane.xlu0 %847
        %vm849 = vcmp.eq.f32.partialorder %v846, %v848
        %v850 = vsel %vm849, %v845, inf
        %851 = vmin.xlane.f32.xlu0 %v850
        %v852 = vpop.xlane.xlu0 %851
        %v853 = vcvt.f32.s32 %v852
        %v854 = vcvt.f32.s32 %v848
        %v855 = vshll.u32 %v854, 16
        %v856 = vadd.s32 %v855, %v853
        %v857 = vsel %vm285, %v503, 2147483647
        %v858 = vand.u32 %v857, 65535
        %v859 = vshra.s32 %v857, 16
        %v860 = vcvt.s32.f32 %v858
        %v861 = vcvt.s32.f32 %v859
        %862 = vmin.xlane.f32.xlu0 %v861
        %v863 = vpop.xlane.xlu0 %862
        %vm864 = vcmp.eq.f32.partialorder %v861, %v863
        %v865 = vsel %vm864, %v860, inf
        %866 = vmin.xlane.f32.xlu0 %v865
        %v867 = vpop.xlane.xlu0 %866
        %v868 = vcvt.f32.s32 %v867
        %v869 = vcvt.f32.s32 %v863
        %v870 = vshll.u32 %v869, 16
        %v871 = vadd.s32 %v870, %v868
        %v872 = vsel %vm285, %v504, 2147483647
        %v873 = vand.u32 %v872, 65535
        %v874 = vshra.s32 %v872, 16
        %v875 = vcvt.s32.f32 %v873
        %v876 = vcvt.s32.f32 %v874
        %877 = vmin.xlane.f32.xlu0 %v876
        %v878 = vpop.xlane.xlu0 %877
        %vm879 = vcmp.eq.f32.partialorder %v876, %v878
        %v880 = vsel %vm879, %v875, inf
        %881 = vmin.xlane.f32.xlu0 %v880
        %v882 = vpop.xlane.xlu0 %881
        %v883 = vcvt.f32.s32 %v882
        %v884 = vcvt.f32.s32 %v878
        %v885 = vshll.u32 %v884, 16
        %v886 = vadd.s32 %v885, %v883
        %v887 = vsel %vm285, %v505, 2147483647
        %v888 = vand.u32 %v887, 65535
        %v889 = vshra.s32 %v887, 16
        %v890 = vcvt.s32.f32 %v888
        %v891 = vcvt.s32.f32 %v889
        %892 = vmin.xlane.f32.xlu0 %v891
        %v893 = vpop.xlane.xlu0 %892
        %vm894 = vcmp.eq.f32.partialorder %v891, %v893
        %v895 = vsel %vm894, %v890, inf
        %896 = vmin.xlane.f32.xlu0 %v895
        %v897 = vpop.xlane.xlu0 %896
        %v898 = vcvt.f32.s32 %v897
        %v899 = vcvt.f32.s32 %v893
        %v900 = vshll.u32 %v899, 16
        %v901 = vadd.s32 %v900, %v898
        %v902 = vsel %vm285, %v506, 2147483647
        %v903 = vand.u32 %v902, 65535
        %v904 = vshra.s32 %v902, 16
        %v905 = vcvt.s32.f32 %v903
        %v906 = vcvt.s32.f32 %v904
        %907 = vmin.xlane.f32.xlu0 %v906
        %v908 = vpop.xlane.xlu0 %907
        %vm909 = vcmp.eq.f32.partialorder %v906, %v908
        %v910 = vsel %vm909, %v905, inf
        %911 = vmin.xlane.f32.xlu0 %v910
        %v912 = vpop.xlane.xlu0 %911
        %v913 = vcvt.f32.s32 %v912
        %v914 = vcvt.f32.s32 %v908
        %v915 = vshll.u32 %v914, 16
        %v916 = vadd.s32 %v915, %v913
        %v917 = vsel %vm285, %v507, 2147483647
        %v918 = vand.u32 %v917, 65535
        %v919 = vshra.s32 %v917, 16
        %v920 = vcvt.s32.f32 %v918
        %v921 = vcvt.s32.f32 %v919
        %922 = vmin.xlane.f32.xlu0 %v921
        %v923 = vpop.xlane.xlu0 %922
        %vm924 = vcmp.eq.f32.partialorder %v921, %v923
        %v925 = vsel %vm924, %v920, inf
        %926 = vmin.xlane.f32.xlu0 %v925
        %v927 = vpop.xlane.xlu0 %926
        %v928 = vcvt.f32.s32 %v927
        %v929 = vcvt.f32.s32 %v923
        %v930 = vshll.u32 %v929, 16
        %v931 = vadd.s32 %v930, %v928
        %v932 = vsel %vm285, %v508, 2147483647
        %v933 = vand.u32 %v932, 65535
        %v934 = vshra.s32 %v932, 16
        %v935 = vcvt.s32.f32 %v933
        %v936 = vcvt.s32.f32 %v934
        %937 = vmin.xlane.f32.xlu0 %v936
        %v938 = vpop.xlane.xlu0 %937
        %vm939 = vcmp.eq.f32.partialorder %v936, %v938
        %v940 = vsel %vm939, %v935, inf
        %941 = vmin.xlane.f32.xlu0 %v940
        %v942 = vpop.xlane.xlu0 %941
        %v943 = vcvt.f32.s32 %v942
        %v944 = vcvt.f32.s32 %v938
        %v945 = vshll.u32 %v944, 16
        %v946 = vadd.s32 %v945, %v943
        %v947 = vsel %vm285, %v509, 2147483647
        %v948 = vand.u32 %v947, 65535
        %v949 = vshra.s32 %v947, 16
        %v950 = vcvt.s32.f32 %v948
        %v951 = vcvt.s32.f32 %v949
        %952 = vmin.xlane.f32.xlu0 %v951
        %v953 = vpop.xlane.xlu0 %952
        %vm954 = vcmp.eq.f32.partialorder %v951, %v953
        %v955 = vsel %vm954, %v950, inf
        %956 = vmin.xlane.f32.xlu0 %v955
        %v957 = vpop.xlane.xlu0 %956
        %v958 = vcvt.f32.s32 %v957
        %v959 = vcvt.f32.s32 %v953
        %v960 = vshll.u32 %v959, 16
        %v961 = vadd.s32 %v960, %v958
        %v962 = vsel %vm285, %v510, 2147483647
        %v963 = vand.u32 %v962, 65535
        %v964 = vshra.s32 %v962, 16
        %v965 = vcvt.s32.f32 %v963
        %v966 = vcvt.s32.f32 %v964
        %967 = vmin.xlane.f32.xlu0 %v966
        %v968 = vpop.xlane.xlu0 %967
        %vm969 = vcmp.eq.f32.partialorder %v966, %v968
        %v970 = vsel %vm969, %v965, inf
        %971 = vmin.xlane.f32.xlu0 %v970
        %v972 = vpop.xlane.xlu0 %971
        %v973 = vcvt.f32.s32 %v972
        %v974 = vcvt.f32.s32 %v968
        %v975 = vshll.u32 %v974, 16
        %v976 = vadd.s32 %v975, %v973
        %v977 = vsel %vm285, %v511, 2147483647
        %v978 = vand.u32 %v977, 65535
        %v979 = vshra.s32 %v977, 16
        %v980 = vcvt.s32.f32 %v978
        %v981 = vcvt.s32.f32 %v979
        %982 = vmin.xlane.f32.xlu0 %v981
        %v983 = vpop.xlane.xlu0 %982
        %vm984 = vcmp.eq.f32.partialorder %v981, %v983
        %v985 = vsel %vm984, %v980, inf
        %986 = vmin.xlane.f32.xlu0 %v985
        %v987 = vpop.xlane.xlu0 %986
        %v988 = vcvt.f32.s32 %v987
        %v989 = vcvt.f32.s32 %v983
        %v990 = vshll.u32 %v989, 16
        %v991 = vadd.s32 %v990, %v988
        %v992 = vld [vmem:[%s247] sm:$0xff]
        %v993 = vld [vmem:[%s247 + $0x8] sm:$0xff]
        %v994 = vld [vmem:[%s251] sm:$0x1]
        %995 = vset.pattern.permute.xlu0 0
        %996 = vperm.xlu0 %995, %v992
        %v997 = vpop.permute.xlu0 %996
        %998 = vset.pattern.permute.xlu0 0
        %999 = vperm.xlu0 %998, %v993
        %v1000 = vpop.permute.xlu0 %999
        %v1001 = vlaneseq
        %v1002 = vshrl.u32 %v1001, 7
        %v1003 = vsub.s32 0, %v1002
        %v1004 = vrot.slane %v994, %v1003
        %v1005 = vmul.u32 %v997, %v1004
        %v1006 = vmul.u32 %v1000, %v1004
        %vm1007 = vcmp.gt.s32.totalorder %v1005, 0
        %vm1008 = vcmp.gt.s32.totalorder %v1006, 0
        %v1009 = vlaneseq
        %v1010 = vshrl.u32 %v1009, 7
        %v1011 = vsub.s32 %v383, %v1010
        %v1012 = vrot.slane %v526, %v1011
        %v1013 = vadd.s32 %v383, 4294967288
        %v1014 = vlaneseq
        %v1015 = vshrl.u32 %v1014, 7
        %v1016 = vsub.s32 %v1013, %v1015
        %v1017 = vrot.slane %v541, %v1016
        %vm1018 = vcmask 130112
        %v1019 = vsel %vm1018, %v1017, %v1012
        %v1020 = vlaneseq
        %v1021 = vshrl.u32 %v1020, 7
        %v1022 = vsub.s32 %v383, %v1021
        %v1023 = vrot.slane %v556, %v1022
        %v1024 = vlaneseq
        %v1025 = vshrl.u32 %v1024, 7
        %v1026 = vsub.s32 %v1013, %v1025
        %v1027 = vrot.slane %v571, %v1026
        %v1028 = vsel %vm1018, %v1027, %v1023
        %v1029 = vlaneseq
        %v1030 = vshrl.u32 %v1029, 7
        %v1031 = vsub.s32 %v383, %v1030
        %v1032 = vrot.slane %v586, %v1031
        %v1033 = vlaneseq
        %v1034 = vshrl.u32 %v1033, 7
        %v1035 = vsub.s32 %v1013, %v1034
        %v1036 = vrot.slane %v601, %v1035
        %v1037 = vsel %vm1018, %v1036, %v1032
        %v1038 = vlaneseq
        %v1039 = vshrl.u32 %v1038, 7
        %v1040 = vsub.s32 %v383, %v1039
        %v1041 = vrot.slane %v616, %v1040
        %v1042 = vlaneseq
        %v1043 = vshrl.u32 %v1042, 7
        %v1044 = vsub.s32 %v1013, %v1043
        %v1045 = vrot.slane %v631, %v1044
        %v1046 = vsel %vm1018, %v1045, %v1041
        %v1047 = vlaneseq
        %v1048 = vshrl.u32 %v1047, 7
        %v1049 = vsub.s32 %v383, %v1048
        %v1050 = vrot.slane %v646, %v1049
        %v1051 = vlaneseq
        %v1052 = vshrl.u32 %v1051, 7
        %v1053 = vsub.s32 %v1013, %v1052
        %v1054 = vrot.slane %v661, %v1053
        %v1055 = vsel %vm1018, %v1054, %v1050
        %v1056 = vlaneseq
        %v1057 = vshrl.u32 %v1056, 7
        %v1058 = vsub.s32 %v383, %v1057
        %v1059 = vrot.slane %v676, %v1058
        %v1060 = vlaneseq
        %v1061 = vshrl.u32 %v1060, 7
        %v1062 = vsub.s32 %v1013, %v1061
        %v1063 = vrot.slane %v691, %v1062
        %v1064 = vsel %vm1018, %v1063, %v1059
        %v1065 = vlaneseq
        %v1066 = vshrl.u32 %v1065, 7
        %v1067 = vsub.s32 %v383, %v1066
        %v1068 = vrot.slane %v706, %v1067
        %v1069 = vlaneseq
        %v1070 = vshrl.u32 %v1069, 7
        %v1071 = vsub.s32 %v1013, %v1070
        %v1072 = vrot.slane %v721, %v1071
        %v1073 = vsel %vm1018, %v1072, %v1068
        %v1074 = vlaneseq
        %v1075 = vshrl.u32 %v1074, 7
        %v1076 = vsub.s32 %v383, %v1075
        %v1077 = vrot.slane %v736, %v1076
        %v1078 = vlaneseq
        %v1079 = vshrl.u32 %v1078, 7
        %v1080 = vsub.s32 %v1013, %v1079
        %v1081 = vrot.slane %v751, %v1080
        %v1082 = vsel %vm1018, %v1081, %v1077
        %v1083 = vlaneseq
        %v1084 = vshrl.u32 %v1083, 7
        %v1085 = vsub.s32 %v383, %v1084
        %v1086 = vrot.slane %v766, %v1085
        %v1087 = vlaneseq
        %v1088 = vshrl.u32 %v1087, 7
        %v1089 = vsub.s32 %v1013, %v1088
        %v1090 = vrot.slane %v781, %v1089
        %v1091 = vsel %vm1018, %v1090, %v1086
        %v1092 = vlaneseq
        %v1093 = vshrl.u32 %v1092, 7
        %v1094 = vsub.s32 %v383, %v1093
        %v1095 = vrot.slane %v796, %v1094
        %v1096 = vlaneseq
        %v1097 = vshrl.u32 %v1096, 7
        %v1098 = vsub.s32 %v1013, %v1097
        %v1099 = vrot.slane %v811, %v1098
        %v1100 = vsel %vm1018, %v1099, %v1095
        %v1101 = vlaneseq
        %v1102 = vshrl.u32 %v1101, 7
        %v1103 = vsub.s32 %v383, %v1102
        %v1104 = vrot.slane %v826, %v1103
        %v1105 = vlaneseq
        %v1106 = vshrl.u32 %v1105, 7
        %v1107 = vsub.s32 %v1013, %v1106
        %v1108 = vrot.slane %v841, %v1107
        %v1109 = vsel %vm1018, %v1108, %v1104
        %v1110 = vlaneseq
        %v1111 = vshrl.u32 %v1110, 7
        %v1112 = vsub.s32 %v383, %v1111
        %v1113 = vrot.slane %v856, %v1112
        %v1114 = vlaneseq
        %v1115 = vshrl.u32 %v1114, 7
        %v1116 = vsub.s32 %v1013, %v1115
        %v1117 = vrot.slane %v871, %v1116
        %v1118 = vsel %vm1018, %v1117, %v1113
        %v1119 = vlaneseq
        %v1120 = vshrl.u32 %v1119, 7
        %v1121 = vsub.s32 %v383, %v1120
        %v1122 = vrot.slane %v886, %v1121
        %v1123 = vlaneseq
        %v1124 = vshrl.u32 %v1123, 7
        %v1125 = vsub.s32 %v1013, %v1124
        %v1126 = vrot.slane %v901, %v1125
        %v1127 = vsel %vm1018, %v1126, %v1122
        %v1128 = vlaneseq
        %v1129 = vshrl.u32 %v1128, 7
        %v1130 = vsub.s32 %v383, %v1129
        %v1131 = vrot.slane %v916, %v1130
        %v1132 = vlaneseq
        %v1133 = vshrl.u32 %v1132, 7
        %v1134 = vsub.s32 %v1013, %v1133
        %v1135 = vrot.slane %v931, %v1134
        %v1136 = vsel %vm1018, %v1135, %v1131
        %v1137 = vlaneseq
        %v1138 = vshrl.u32 %v1137, 7
        %v1139 = vsub.s32 %v383, %v1138
        %v1140 = vrot.slane %v946, %v1139
        %v1141 = vlaneseq
        %v1142 = vshrl.u32 %v1141, 7
        %v1143 = vsub.s32 %v1013, %v1142
        %v1144 = vrot.slane %v961, %v1143
        %v1145 = vsel %vm1018, %v1144, %v1140
        %v1146 = vlaneseq
        %v1147 = vshrl.u32 %v1146, 7
        %v1148 = vsub.s32 %v383, %v1147
        %v1149 = vrot.slane %v976, %v1148
        %v1150 = vlaneseq
        %v1151 = vshrl.u32 %v1150, 7
        %v1152 = vsub.s32 %v1013, %v1151
        %v1153 = vrot.slane %v991, %v1152
        %v1154 = vsel %vm1018, %v1153, %v1149
        %vm1155 = vcmask 1041409
        %v1156 = vsel %vm1155, %v1028, %v1019
        %vm1157 = vcmask 1042434
        %v1158 = vsel %vm1157, %v1037, %v1156
        %vm1159 = vcmask 1043459
        %v1160 = vsel %vm1159, %v1046, %v1158
        %vm1161 = vcmask 1044484
        %v1162 = vsel %vm1161, %v1055, %v1160
        %vm1163 = vcmask 1045509
        %v1164 = vsel %vm1163, %v1064, %v1162
        %vm1165 = vcmask 1046534
        %v1166 = vsel %vm1165, %v1073, %v1164
        %vm1167 = vcmask 1047559
        %v1168 = vsel %vm1167, %v1082, %v1166
        %v1169 = vsel %vm1155, %v1100, %v1091
        %v1170 = vsel %vm1157, %v1109, %v1169
        %v1171 = vsel %vm1159, %v1118, %v1170
        %v1172 = vsel %vm1161, %v1127, %v1171
        %v1173 = vsel %vm1163, %v1136, %v1172
        %v1174 = vsel %vm1165, %v1145, %v1173
        %v1175 = vsel %vm1167, %v1154, %v1174
        %v1176 = vsel %vm1007, %v1168, 0
        %v1177 = vsel %vm1008, %v1175, 0
        %vm1178 = vcmask 130048
        %1179 = vst.msk [vmem:[%s227] sm:$0xff] %vm1178, %v1176
        %1180 = vst.msk [vmem:[%s227 + $0x8] sm:$0xff] %vm1178, %v1177
        %s1181 = sand.u32 %s121, 1
        %s1182 = scalar_lea.sflag [#allocation3], %s1181
        %s1183 = sand.u32 %s121, 1
        %s1184 = smul.addr %s1183, 16
        %s1185 = scalar_lea.vmem [#allocation2], %s1184
        // Predicated region
        $region33: #{tpu_custom_call.1} parent=31 // pred_check
          %p1186 = pneg %p131
        $region34: #{tpu_custom_call.1} parent=31 // pred_check_branch
          %1188 = sbr.rel (%p1186) target = $region36
        $region35: #{tpu_custom_call.1} parent=31 // pred_region
          %s1189 = smul.u32 2, %s22
          %s1191 = ssub.s32 256, 256
          %1192 = vsyncadd %s1182, %s1191
          %s1193 = smul.addr %s21, 2
          %s1194 = sadd.s32 %s1189, %s1193
          %s1195 = smul.addr %s1194, 128
          %s1196 = scalar_lea.hbm %s3, %s1195
          %s1197 = sshll.u32 %s1185, 4
          %s1198 = int_to_ptr.vmem [resolvable:$true] %s1197
          %1203 = dma.vmem_to_hbm [thread:$0]  %s1198, 256, %s1196, %s1182, 128, 128, 8
        $region36: #{tpu_custom_call.1} parent=31 // pred_fallthru
          _
      $region32: #{tpu_custom_call.1} parent=5 // pred_fallthru
        _
      %p1204 = scmp.le.s32.totalorder 2, %s12
      // Predicated region
      $region37: #{tpu_custom_call.1} parent=5 // pred_check
        %p1205 = pneg %p1204
      $region38: #{tpu_custom_call.1} parent=5 // pred_check_branch
        %1207 = sbr.rel (%p1205) target = $region40
      $region39: #{tpu_custom_call.1} parent=5 // pred_region
        %s1208 = ssub.s32 %s12, 2
        // Predicated region
        $region41: #{tpu_custom_call.1} parent=39 // pred_check
          %p1209 = pneg %p137
        $region42: #{tpu_custom_call.1} parent=39 // pred_check_branch
          %1211 = sbr.rel (%p1209) target = $region44
        $region43: #{tpu_custom_call.1} parent=39 // pred_region
          %s1212 = sand.u32 %s122, 1
          %s1213 = scalar_lea.sflag [#allocation3], %s1212
          %s1214 = sand.u32 %s122, 1
          %s1215 = smul.addr %s1214, 16
          %s1216 = scalar_lea.vmem [#allocation2], %s1215
          %1217 = dma.done %s1213, 256
        $region44: #{tpu_custom_call.1} parent=39 // pred_fallthru
          _
      $region40: #{tpu_custom_call.1} parent=5 // pred_fallthru
        _
    $region6: #{tpu_custom_call.1} parent=1 // loop_footer
      %s16 = sadd.s32 1, %s12
    $region7: #{tpu_custom_call.1} parent=1 // loop_footer_branch
      %11 = sbr.rel target = $region3
    $region8: #{tpu_custom_call.1} parent=1 // loop_exit
      _
    %1218 = vsyncpa [#allocation3], 1
    %s1219 = scalar_lea.sflag [#allocation3], 1
    %1220 = vsyncpa %s1219, 1

</llo_original>
